<compile_context>
chip_gen: v5e
topology: v5e:2x2
jax: 0.10.0
libtpu: 0.0.40
codegen_flags: <defaults>
</compile_context>

<pallas_src>
import functools

import jax
import jax.numpy as jnp
from jax import lax
from jax.experimental import pallas as pl
from jax.experimental.pallas import tpu as pltpu

bn_eps = 1e-5
bn_momentum = 0.01

_VMEM_LIMIT_BYTES = 32 * 1024 * 1024   # safe scoped limit on v5e / v6e / v7x
_TILE_BUDGET_BYTES = 8 * 1024 * 1024   # double-buffered x + out tiles


def _pick_tile_l(l, c_in, c_out, in_bytes, out_bytes):
    """Pick the node-axis tile so double-buffered tiles fit the VMEM budget."""
    per_col = 2 * (c_in * in_bytes + c_out * out_bytes)   # 2x: double buffering
    tile = (_TILE_BUDGET_BYTES // max(per_col, 1)) // 128 * 128
    tile = max(128, min(tile, 8192))
    return l if l <= tile else tile


def _stats_kernel(x_ref, w_ref, sum_ref, sq_ref, *, l_total):
    # x_ref: (C_in, tile_l); w_ref: (C_out, C_in)
    # sum_ref / sq_ref: (C_out, 1) f32 accumulators resident across the grid.
    b = pl.program_id(0)
    j = pl.program_id(1)

    @pl.when(jnp.logical_and(b == 0, j == 0))
    def _init():
        sum_ref[...] = jnp.zeros_like(sum_ref)
        sq_ref[...] = jnp.zeros_like(sq_ref)

    # 1x1 conv == channel matmul; keep operand dtypes, accumulate in f32.
    z = jnp.dot(w_ref[...], x_ref[...], preferred_element_type=jnp.float32)

    if l_total is not None:  # mask padded columns of a partial last tile
        tile_l = z.shape[-1]
        col = j * tile_l + lax.broadcasted_iota(jnp.int32, z.shape, 1)
        z = jnp.where(col < l_total, z, 0.0)

    # Cross-lane reductions go to the otherwise-idle XLU, once per tile.
    sum_ref[...] += jnp.sum(z, axis=1, keepdims=True)
    sq_ref[...] += jnp.sum(z * z, axis=1, keepdims=True)


def _apply_kernel(x_ref, ws_ref, shift_ref, o_ref):
    # x_ref: (C_in, tile_l); ws_ref: (C_out, C_in) with BN scale folded in;
    # shift_ref: (C_out, 1); o_ref: (C_out, tile_l) -> lane-dense stores.
    y = jnp.dot(ws_ref[...], x_ref[...], preferred_element_type=jnp.float32)
    o_ref[...] = (y + shift_ref[...]).astype(o_ref.dtype)


def octree_conv1x1_bn(data_in, conv_weight, conv_bias=None, bn_gamma=None,
                      bn_beta=None, running_mean=None, running_var=None,
                      eps=bn_eps, momentum=bn_momentum, tile_l=None):
    """Forward pass matching OctreeConv1x1Bn (training-mode BatchNorm).

    data_in:      (N, C_in, H, W)   (W is 1 for octree features)
    conv_weight:  (C_out, C_in)     (Conv1d k=1 weight, squeezed)
    conv_bias:    (C_out,) or None  (cancelled by BN; only affects running_mean)
    bn_gamma/beta:(C_out,)
    running_mean/var: (C_out,) or None; if both given, updated stats returned.
    returns: (N, C_out, H, W)  [, new_running_mean, new_running_var]
    """
    n, c_in, h, w = data_in.shape
    c_out = conv_weight.shape[0]
    l = h * w

    # Free reshape (no transpose): nodes stay on the minor (lane) axis.
    x3d = data_in.reshape(n, c_in, l)
    out_dtype = data_in.dtype

    if tile_l is None:
        tile_l = _pick_tile_l(l, c_in, c_out, data_in.dtype.itemsize,
                              jnp.dtype(out_dtype).itemsize)
    grid_l = pl.cdiv(l, tile_l)
    needs_mask = (l % tile_l) != 0

    # ---- pass 1: per-channel sum / sumsq of z = W @ x ----------------------
    sum_z, sq_z = pl.pallas_call(
        functools.partial(_stats_kernel, l_total=l if needs_mask else None),
        out_shape=(jax.ShapeDtypeStruct((c_out, 1), jnp.float32),
                   jax.ShapeDtypeStruct((c_out, 1), jnp.float32)),
        grid_spec=pltpu.PrefetchScalarGridSpec(
            num_scalar_prefetch=0,
            grid=(n, grid_l),
            in_specs=[
                pl.BlockSpec((None, c_in, tile_l), lambda b, j: (b, 0, j)),
                pl.BlockSpec((c_out, c_in), lambda b, j: (0, 0)),
            ],
            out_specs=(pl.BlockSpec((c_out, 1), lambda b, j: (0, 0)),
                       pl.BlockSpec((c_out, 1), lambda b, j: (0, 0))),
        ),
        compiler_params=pltpu.CompilerParams(
            dimension_semantics=("arbitrary", "arbitrary"),
            vmem_limit_bytes=_VMEM_LIMIT_BYTES),
    )(x3d, conv_weight)

    # ---- fold BN into one affine (tiny (C_out,) math in plain JAX) ---------
    count = jnp.float32(n * l)
    mean_z = sum_z[:, 0] / count
    # TODO(synk): E[z^2]-E[z]^2 can lose precision for very large means; a
    # shifted-sumsq pass would be needed for that regime.
    var_z = jnp.maximum(sq_z[:, 0] / count - mean_z * mean_z, 0.0)
    scale = bn_gamma.astype(jnp.float32) * lax.rsqrt(var_z + eps)
    # The conv bias is cancelled exactly by the BN mean subtraction.
    shift = bn_beta.astype(jnp.float32) - mean_z * scale
    w_scaled = (conv_weight.astype(jnp.float32)
                * scale[:, None]).astype(conv_weight.dtype)
    shift2d = shift[:, None]  # (C_out, 1)

    # ---- pass 2: out = (scale * W) @ x + shift, lane-dense output ----------
    out3d = pl.pallas_call(
        _apply_kernel,
        out_shape=jax.ShapeDtypeStruct((n, c_out, l), out_dtype),
        grid_spec=pltpu.PrefetchScalarGridSpec(
            num_scalar_prefetch=0,
            grid=(n, grid_l),
            in_specs=[
                pl.BlockSpec((None, c_in, tile_l), lambda b, j: (b, 0, j)),
                pl.BlockSpec((c_out, c_in), lambda b, j: (0, 0)),
                pl.BlockSpec((c_out, 1), lambda b, j: (0, 0)),
            ],
            out_specs=pl.BlockSpec((None, c_out, tile_l),
                                   lambda b, j: (b, 0, j)),
        ),
        compiler_params=pltpu.CompilerParams(
            dimension_semantics=("parallel", "parallel"),
            vmem_limit_bytes=_VMEM_LIMIT_BYTES),
    )(x3d, w_scaled, shift2d)

    out = out3d.reshape(n, c_out, h, w)

    if running_mean is not None and running_var is not None:
        bias = (conv_bias.astype(jnp.float32) if conv_bias is not None
                else jnp.zeros((c_out,), jnp.float32))
        mean_y = mean_z + bias
        var_unbiased = var_z * count / jnp.maximum(count - 1.0, 1.0)
        new_rm = (1.0 - momentum) * running_mean + momentum * mean_y
        new_rv = (1.0 - momentum) * running_var + momentum * var_unbiased
        return (out, new_rm.astype(running_mean.dtype),
                new_rv.astype(running_var.dtype))
    return out


def _reference(data_in, conv_weight, conv_bias, bn_gamma, bn_beta, eps=bn_eps):
    # Pure-JAX reference of the PyTorch forward (training-mode BN).
    y = jnp.einsum('nchw,oc->nohw', data_in, conv_weight)
    if conv_bias is not None:
        y = y + conv_bias[None, :, None, None]
    mean = jnp.mean(y, axis=(0, 2, 3), keepdims=True)
    var = jnp.mean((y - mean) ** 2, axis=(0, 2, 3), keepdims=True)
    y_hat = (y - mean) * lax.rsqrt(var + eps)
    return y_hat * bn_gamma[None, :, None, None] + bn_beta[None, :, None, None]


if __name__ == "__main__":
    key = jax.random.PRNGKey(0)

    def run_case(case_id, n, c_in, c_out, h, w, tile_l=None,
                 check_running=False):
        kx, kw, kg, kb = jax.random.split(jax.random.fold_in(key, case_id), 4)
        x = jax.random.normal(kx, (n, c_in, h, w), dtype=jnp.float32)
        bound = 1.0 / float(c_in) ** 0.5
        conv_w = jax.random.uniform(kw, (c_out, c_in), jnp.float32,
                                    -bound, bound)
        gamma = jax.random.uniform(kg, (c_out,), jnp.float32, 0.5, 1.5)
        beta = 0.1 * jax.random.normal(kb, (c_out,), jnp.float32)
        conv_b = None  # use_bias=False (module default)

        ref = _reference(x, conv_w, conv_b, gamma, beta)
        if check_running:
            rm = jnp.zeros((c_out,), jnp.float32)
            rv = jnp.ones((c_out,), jnp.float32)
            out, new_rm, new_rv = octree_conv1x1_bn(
                x, conv_w, conv_b, gamma, beta, rm, rv, tile_l=tile_l)
            out, new_rm, new_rv = jax.block_until_ready((out, new_rm, new_rv))
            y = jnp.einsum('nchw,oc->nohw', x, conv_w)
            bm = jnp.mean(y, axis=(0, 2, 3))
            bv = jnp.var(y, axis=(0, 2, 3), ddof=1)
            ref_rm = (1.0 - bn_momentum) * rm + bn_momentum * bm
            ref_rv = (1.0 - bn_momentum) * rv + bn_momentum * bv
            assert jnp.allclose(new_rm, ref_rm, atol=1e-4, rtol=1e-4)
            assert jnp.allclose(new_rv, ref_rv, atol=1e-4, rtol=1e-4)
        else:
            out = octree_conv1x1_bn(x, conv_w, conv_b, gamma, beta,
                                    tile_l=tile_l)
            out = jax.block_until_ready(out)

        assert out.shape == (n, c_out, h, w)
        err = jnp.max(jnp.abs(out - ref))
        assert jnp.allclose(out, ref, atol=1e-4, rtol=1e-4), \
            f"case {case_id}: max err {err}"

    # Small shapes consistent with the module (octree node features, W=1).
    run_case(0, n=2, c_in=4, c_out=8, h=16, w=1)                    # single tile
    run_case(1, n=2, c_in=8, c_out=16, h=512, w=1, tile_l=128,
             check_running=True)                                    # multi-tile
    run_case(2, n=1, c_in=4, c_out=8, h=320, w=1, tile_l=128)       # padded tile

    print("KERNEL_OK")
</pallas_src>

<mosaic_0001>
module attributes {stable_mosaic.version = 11 : i64} {
  func.func @_stats_kernel(%arg0: i32, %arg1: i32, %arg2: memref<1x4x16xf32, #tpu.memory_space<vmem>>, %arg3: memref<8x4xf32, #tpu.memory_space<vmem>>, %arg4: memref<8x1xf32, #tpu.memory_space<vmem>>, %arg5: memref<8x1xf32, #tpu.memory_space<vmem>>) attributes {dimension_semantics = [#tpu.dimension_semantics<arbitrary>, #tpu.dimension_semantics<arbitrary>], iteration_bounds = array<i64: 2, 1>, scalar_prefetch = 0 : i64, scratch_operands = 0 : i64, tpu.core_type = #tpu.core_type<tc>, window_params = [{transform_indices = @transform_0, window_bounds = array<i64: 1, 4, 16>}, {pipeline_mode = #tpu.pipeline_mode<synchronous>, transform_indices = @transform_1, window_bounds = array<i64: 8, 4>}, {pipeline_mode = #tpu.pipeline_mode<synchronous>, transform_indices = @transform_2, window_bounds = array<i64: 8, 1>}, {pipeline_mode = #tpu.pipeline_mode<synchronous>, transform_indices = @transform_3, window_bounds = array<i64: 8, 1>}]} {
    %c0_i32 = arith.constant 0 : i32
    %0 = arith.cmpi eq, %arg0, %c0_i32 : i32
    %c0_i32_0 = arith.constant 0 : i32
    %1 = arith.cmpi eq, %arg1, %c0_i32_0 : i32
    %2 = arith.andi %0, %1 : i1
    %3 = arith.extui %2 : i1 to i32
    %c0_i32_1 = arith.constant 0 : i32
    %4 = arith.cmpi ne, %3, %c0_i32_1 : i32
    scf.if %4 {
      %cst_16 = arith.constant 0.000000e+00 : f32
      %20 = vector.broadcast %cst_16 : f32 to vector<8x1xf32>
      %c0_17 = arith.constant 0 : index
      %c0_18 = arith.constant 0 : index
      %21 = vector.load %arg4[%c0_17, %c0_18] : memref<8x1xf32, #tpu.memory_space<vmem>>, vector<8x1xf32>
      tpu.vector_store %arg4[%c0_17, %c0_18], %20 {strides = array<i32>} : memref<8x1xf32, #tpu.memory_space<vmem>>, vector<8x1xf32>,
      %cst_19 = arith.constant 0.000000e+00 : f32
      %22 = vector.broadcast %cst_19 : f32 to vector<8x1xf32>
      %c0_20 = arith.constant 0 : index
      %c0_21 = arith.constant 0 : index
      %23 = vector.load %arg5[%c0_20, %c0_21] : memref<8x1xf32, #tpu.memory_space<vmem>>, vector<8x1xf32>
      tpu.vector_store %arg5[%c0_20, %c0_21], %22 {strides = array<i32>} : memref<8x1xf32, #tpu.memory_space<vmem>>, vector<8x1xf32>,
    } else {
    }
    %c0 = arith.constant 0 : index
    %c0_2 = arith.constant 0 : index
    %5 = vector.load %arg3[%c0, %c0_2] : memref<8x4xf32, #tpu.memory_space<vmem>>, vector<8x4xf32>
    %c0_3 = arith.constant 0 : index
    %c0_4 = arith.constant 0 : index
    %c0_5 = arith.constant 0 : index
    %6 = vector.load %arg2[%c0_3, %c0_4, %c0_5] : memref<1x4x16xf32, #tpu.memory_space<vmem>>, vector<1x4x16xf32>
    %7 = vector.shape_cast %6 : vector<1x4x16xf32> to vector<4x16xf32>
    %cst = arith.constant dense<0.000000e+00> : vector<8x16xf32>
    %8 = tpu.matmul %5, %7, %cst {dimension_numbers = #tpu.dot_dimension_numbers<[1], [0], [0], [1], [0, 0, 1, 1], [], []>} : vector<8x4xf32>, vector<4x16xf32>, vector<8x16xf32> -> vector<8x16xf32>
    %c0_6 = arith.constant 0 : index
    %c0_7 = arith.constant 0 : index
    %9 = vector.load %arg4[%c0_6, %c0_7] : memref<8x1xf32, #tpu.memory_space<vmem>>, vector<8x1xf32>
    %cst_8 = arith.constant dense<0.000000e+00> : vector<8xf32>
    %10 = vector.multi_reduction <add>, %8, %cst_8 [1] : vector<8x16xf32> to vector<8xf32>
    %11 = vector.shape_cast %10 : vector<8xf32> to vector<8x1xf32>
    %12 = arith.addf %9, %11 : vector<8x1xf32>
    %c0_9 = arith.constant 0 : index
    %c0_10 = arith.constant 0 : index
    %13 = vector.load %arg4[%c0_9, %c0_10] : memref<8x1xf32, #tpu.memory_space<vmem>>, vector<8x1xf32>
    tpu.vector_store %arg4[%c0_9, %c0_10], %12 {strides = array<i32>} : memref<8x1xf32, #tpu.memory_space<vmem>>, vector<8x1xf32>,
    %c0_11 = arith.constant 0 : index
    %c0_12 = arith.constant 0 : index
    %14 = vector.load %arg5[%c0_11, %c0_12] : memref<8x1xf32, #tpu.memory_space<vmem>>, vector<8x1xf32>
    %15 = arith.mulf %8, %8 : vector<8x16xf32>
    %cst_13 = arith.constant dense<0.000000e+00> : vector<8xf32>
    %16 = vector.multi_reduction <add>, %15, %cst_13 [1] : vector<8x16xf32> to vector<8xf32>
    %17 = vector.shape_cast %16 : vector<8xf32> to vector<8x1xf32>
    %18 = arith.addf %14, %17 : vector<8x1xf32>
    %c0_14 = arith.constant 0 : index
    %c0_15 = arith.constant 0 : index
    %19 = vector.load %arg5[%c0_14, %c0_15] : memref<8x1xf32, #tpu.memory_space<vmem>>, vector<8x1xf32>
    tpu.vector_store %arg5[%c0_14, %c0_15], %18 {strides = array<i32>} : memref<8x1xf32, #tpu.memory_space<vmem>>, vector<8x1xf32>,
    return
  }
  func.func @transform_0(%arg0: i32, %arg1: i32) -> (i32, i32, i32) {
    %c0_i32 = arith.constant 0 : i32
    %c0_i32_0 = arith.constant 0 : i32
    return %arg0, %c0_i32, %arg1 : i32, i32, i32
  }
  func.func @transform_1(%arg0: i32, %arg1: i32) -> (i32, i32) {
    %c0_i32 = arith.constant 0 : i32
    %c0_i32_0 = arith.constant 0 : i32
    %c0_i32_1 = arith.constant 0 : i32
    return %c0_i32, %c0_i32_0 : i32, i32
  }
  func.func @transform_2(%arg0: i32, %arg1: i32) -> (i32, i32) {
    %c0_i32 = arith.constant 0 : i32
    %c0_i32_0 = arith.constant 0 : i32
    %c0_i32_1 = arith.constant 0 : i32
    return %c0_i32, %c0_i32_0 : i32, i32
  }
  func.func @transform_3(%arg0: i32, %arg1: i32) -> (i32, i32) {
    %c0_i32 = arith.constant 0 : i32
    %c0_i32_0 = arith.constant 0 : i32
    %c0_i32_1 = arith.constant 0 : i32
    return %c0_i32, %c0_i32_0 : i32, i32
  }
}

</mosaic_0001>

<llo_original>
// kernel: tpu_custom_call.1
$region0: #{tpu_custom_call.1}
  #allocation0 [shape = 'u32[]', space=smem, size = 0x4, offset = 0x4, fixed_abs, tag = 'smem constant byte address 0x4 - core index']
  #allocation1 [shape = 'u32[72,128]{1,0:T(1,128)}', space=vmem, size = 0x9000, scoped, tag = 'internal scratch']
  %s0 = inlined_call_operand.vmem [shape: f32[2,4,16], index: 0, kind: input, shape index: {}]
  %s1 = inlined_call_operand.vmem [shape: f32[8,4], index: 1, kind: input, shape index: {}]
  %s2 = inlined_call_operand.vmem [shape: f32[8,1], index: 2, kind: output, shape index: {0}]
  %s3 = inlined_call_operand.vmem [shape: f32[8,1], index: 3, kind: output, shape index: {1}]
  %4 = xla_tuple %s2, %s3
  %s5 = sld [smem:[#allocation0]]
  $region53: #{tpu_custom_call.1} parent=0
    _
  %s7 = ssub.s32 1, %s5
  %s8 = scalar_select 0, %s7, %s5
  loop: start=0, step=1, limit=4
  $region2: #{tpu_custom_call.1} parent=0 // loop_pre_header
    _
  $region3: #{tpu_custom_call.1} parent=0 // loop_header
    %s10 = sphi 0, %s14
    %p11 = scmp.ge.s32.totalorder %s10, 4
    %s17 = sphi 0, %s29
    %s18 = sphi 0, %s25
    %s19 = sphi 0, %s17
    %s20 = sphi 0, %s18
    %s21 = sphi 0, %s19
    %s22 = sphi 0, %s20
    %s34 = sphi 0, %s36
    %s37 = sphi 0, %s34
    %s38 = sphi 0, %s37
    %s54 = sphi 0, %s38
    %s58 = sphi 0, %s58
    %s60 = sphi 0, %s58
    %s61 = sphi 0, %s60
    %s75 = sphi 0, %s61
    %s79 = sphi 0, %s79
    %s81 = sphi 0, %s79
    %s82 = sphi 0, %s81
    %s96 = sphi 0, %s82
    %s100 = sphi 0, %s100
    %s102 = sphi 0, %s100
    %s103 = sphi 0, %s102
    %s117 = sphi 0, %s103
  $region4: #{tpu_custom_call.1} parent=0 // loop_header_branch
    %13 = sbr.rel (%p11) target = $region8
  $region5: #{tpu_custom_call.1} parent=0 // loop_body
    %s15 = ssub.s32 %s10, 1
    %s16 = ssub.s32 %s10, 2
    %s23 = sadd.s32 1, %s18
    %p24 = scmp.ge.s32.totalorder %s23, 1
    %s25 = scalar_select %p24, 0, %s23
    %s26 = sadd.s32 1, %s17
    %s27 = scalar_select %p24, %s26, %s17
    %p28 = scmp.ge.s32.totalorder %s27, 2
    %s29 = scalar_select %p28, 0, %s27
    %s30 = ssub.s32 %s17, %s29
    %s31 = ssub.s32 %s18, %s25
    %s32 = sor.u32 %s30, %s31
    %p33 = scmp.eq.s32.totalorder %s32, 0
    %s35 = sadd.s32 %s34, 1
    %s36 = scalar_select %p33, %s34, %s35
    %p39 = pneg %p33
    %p40 = scmp.eq.s32.totalorder %s10, 1
    %p41 = por %p39, %p40
    %p42 = scmp.ne.s32.totalorder %s34, %s37
    %p43 = scmp.eq.s32.totalorder %s10, 0
    %p44 = por %p42, %p43
    %p45 = scmp.ne.s32.totalorder %s34, %s37
    %p46 = scmp.eq.s32.totalorder %s15, 1
    %p47 = por %p45, %p46
    %p48 = scmp.ne.s32.totalorder %s37, %s38
    %p49 = scmp.eq.s32.totalorder %s15, 0
    %p50 = por %p48, %p49
    %p51 = scmp.ne.s32.totalorder %s37, %s38
    %p52 = scmp.eq.s32.totalorder %s16, 1
    %p53 = por %p51, %p52
    %p55 = scmp.ne.s32.totalorder %s38, %s54
    %p56 = scmp.eq.s32.totalorder %s16, 0
    %p57 = por %p55, %p56
    %s59 = sadd.s32 %s58, 1
    %p62 = scmp.eq.s32.totalorder %s10, 1
    %p63 = scmp.ne.s32.totalorder %s58, %s60
    %p64 = scmp.eq.s32.totalorder %s10, 0
    %p65 = por %p63, %p64
    %p66 = scmp.ne.s32.totalorder %s58, %s60
    %p67 = scmp.eq.s32.totalorder %s15, 1
    %p68 = por %p66, %p67
    %p69 = scmp.ne.s32.totalorder %s60, %s61
    %p70 = scmp.eq.s32.totalorder %s15, 0
    %p71 = por %p69, %p70
    %p72 = scmp.ne.s32.totalorder %s60, %s61
    %p73 = scmp.eq.s32.totalorder %s16, 1
    %p74 = por %p72, %p73
    %p76 = scmp.ne.s32.totalorder %s61, %s75
    %p77 = scmp.eq.s32.totalorder %s16, 0
    %p78 = por %p76, %p77
    %s80 = sadd.s32 %s79, 1
    %p83 = scmp.eq.s32.totalorder %s10, 1
    %p84 = scmp.ne.s32.totalorder %s79, %s81
    %p85 = scmp.eq.s32.totalorder %s10, 0
    %p86 = por %p84, %p85
    %p87 = scmp.ne.s32.totalorder %s79, %s81
    %p88 = scmp.eq.s32.totalorder %s15, 1
    %p89 = por %p87, %p88
    %p90 = scmp.ne.s32.totalorder %s81, %s82
    %p91 = scmp.eq.s32.totalorder %s15, 0
    %p92 = por %p90, %p91
    %p93 = scmp.ne.s32.totalorder %s81, %s82
    %p94 = scmp.eq.s32.totalorder %s16, 1
    %p95 = por %p93, %p94
    %p97 = scmp.ne.s32.totalorder %s82, %s96
    %p98 = scmp.eq.s32.totalorder %s16, 0
    %p99 = por %p97, %p98
    %s101 = sadd.s32 %s100, 1
    %p104 = scmp.eq.s32.totalorder %s10, 1
    %p105 = scmp.ne.s32.totalorder %s100, %s102
    %p106 = scmp.eq.s32.totalorder %s10, 0
    %p107 = por %p105, %p106
    %p108 = scmp.ne.s32.totalorder %s100, %s102
    %p109 = scmp.eq.s32.totalorder %s15, 1
    %p110 = por %p108, %p109
    %p111 = scmp.ne.s32.totalorder %s102, %s103
    %p112 = scmp.eq.s32.totalorder %s15, 0
    %p113 = por %p111, %p112
    %p114 = scmp.ne.s32.totalorder %s102, %s103
    %p115 = scmp.eq.s32.totalorder %s16, 1
    %p116 = por %p114, %p115
    %p118 = scmp.ne.s32.totalorder %s103, %s117
    %p119 = scmp.eq.s32.totalorder %s16, 0
    %p120 = por %p118, %p119
    %p121 = scmp.le.s32.totalorder 1, %s10
    %p122 = scmp.lt.s32.totalorder %s10, 3
    %p123 = pnand %p121, %p122
    %p124 = pneg %p123
    // Predicated region
    $region9: #{tpu_custom_call.1} parent=5 // pred_check
      _
    $region10: #{tpu_custom_call.1} parent=5 // pred_check_branch
      %126 = sbr.rel (%p123) target = $region12
    $region11: #{tpu_custom_call.1} parent=5 // pred_region
      %s127 = ssub.s32 %s10, 1
      // Predicated region
      $region13: #{tpu_custom_call.1} parent=11 // pred_check
        %p128 = pneg %p71
      $region14: #{tpu_custom_call.1} parent=11 // pred_check_branch
        %130 = sbr.rel (%p128) target = $region16
      $region15: #{tpu_custom_call.1} parent=11 // pred_region
        _
      $region16: #{tpu_custom_call.1} parent=11 // pred_fallthru
        _
    $region12: #{tpu_custom_call.1} parent=5 // pred_fallthru
      _
    %p131 = scmp.lt.s32.totalorder %s10, 2
    // Predicated region
    $region17: #{tpu_custom_call.1} parent=5 // pred_check
      %p132 = pneg %p131
    $region18: #{tpu_custom_call.1} parent=5 // pred_check_branch
      %134 = sbr.rel (%p132) target = $region20
    $region19: #{tpu_custom_call.1} parent=5 // pred_region
      // Predicated region
      $region21: #{tpu_custom_call.1} parent=19 // pred_check
        %p135 = pneg %p44
      $region22: #{tpu_custom_call.1} parent=19 // pred_check_branch
        %137 = sbr.rel (%p135) target = $region24
      $region23: #{tpu_custom_call.1} parent=19 // pred_region
        %p138 = scmp.lt.s32.totalorder %s17, 1
        %s139 = scalar_select %p138, %s17, 1
        %p140 = scmp.lt.s32.totalorder %s18, 0
        %s141 = scalar_select %p140, %s18, 0
        %s142 = sadd.s32 %s141, %s139
        %s143 = smul.addr %s142, 4
        %s144 = scalar_lea.vmem %s0, %s143
      $region24: #{tpu_custom_call.1} parent=19 // pred_fallthru
        _
    $region20: #{tpu_custom_call.1} parent=5 // pred_fallthru
      _
    %p145 = scmp.le.s32.totalorder 1, %s10
    %p146 = scmp.lt.s32.totalorder %s10, 3
    %p147 = pnand %p145, %p146
    %p148 = pneg %p147
    // Predicated region
    $region25: #{tpu_custom_call.1} parent=5 // pred_check
      _
    $region26: #{tpu_custom_call.1} parent=5 // pred_check_branch
      %150 = sbr.rel (%p147) target = $region28
    $region27: #{tpu_custom_call.1} parent=5 // pred_region
      %s151 = ssub.s32 %s10, 1
      %p152 = scmp.lt.s32.totalorder %s19, 1
      %s153 = scalar_select %p152, %s19, 1
      %p154 = scmp.lt.s32.totalorder %s20, 0
      %s155 = scalar_select %p154, %s20, 0
      %s156 = sadd.s32 %s155, %s153
      %s157 = smul.addr %s156, 4
      %s158 = scalar_lea.vmem %s0, %s157
      %p159 = pneg %p50
      %p160 = pneg %p47
      %p161 = pneg %p71
      %p162 = pneg %p68
      %p163 = pneg %p92
      %p164 = pneg %p89
      %p165 = pneg %p113
      %p166 = pneg %p110
      %p167 = scmp.lt.s32.totalorder %s19, 1
      %s168 = scalar_select %p167, %s19, 1
      %p169 = scmp.lt.s32.totalorder %s20, 0
      %s170 = scalar_select %p169, %s20, 0
      %s171 = sadd.s32 %s170, %s168
      %s172 = smul.addr %s171, 4
      %s173 = scalar_lea.vmem %s0, %s172
      %p174 = scmp.eq.s32.totalorder %s19, 0
      %p175 = scmp.eq.s32.totalorder %s20, 0
      %p176 = pnand %p174, %p175
      %p177 = pneg %p176
      // Predicated region
      $region29: #{tpu_custom_call.1} parent=27 // pred_check
        _
      $region30: #{tpu_custom_call.1} parent=27 // pred_check_branch
        %179 = sbr.rel (%p176) target = $region32
      $region31: #{tpu_custom_call.1} parent=27 // pred_region
        %vm180 = vcmask 7168
        %181 = vst.msk [vmem:[%s2] sm:$0xff] %vm180, 0.0
        %182 = vst.msk [vmem:[%s3] sm:$0xff] %vm180, 0.0
      $region32: #{tpu_custom_call.1} parent=27 // pred_fallthru
        _
      %v183 = vld [vmem:[%s1] sm:$0xff]
      %v184 = vld [vmem:[%s173] sm:$0xf]
      %vm185 = vcmask 31744
      %v187 = vsel %vm185, %v183, 0
      %vm189 = vcmask 1043456
      %v191 = vsel %vm189, %v184, 0
      %193 = vmatpush.msra.mxu0 0.0
      %194 = vmatpush.msra.mxu0 0.0
      %195 = vmatpush.msra.mxu0 0.0
      %196 = vmatpush.msra.mxu0 0.0
      %197 = vmatpush.msra.mxu0 0.0
      %198 = vmatpush.msra.mxu0 0.0
      %199 = vmatpush.msra.mxu0 0.0
      %200 = vmatpush.msra.mxu0 0.0
      %201 = vmatpush.msra.mxu0 0.0
      %202 = vmatpush.msra.mxu0 0.0
      %203 = vmatpush.msra.mxu0 0.0
      %204 = vmatpush.msra.mxu0 0.0
      %205 = vmatpush.msra.mxu0 0.0
      %206 = vmatpush.msra.mxu0 0.0
      %207 = vmatpush.msra.mxu0 0.0
      %208 = vmatpush.msra.mxu0 %v191
      %209 = vmatmul.f32.gmra.mxu0 %v187
      %v210 = vpop.f32.mrf.mxu0
      %v211 = vadd.f32 0.0, %v210
      %212 = vdwg.mxu0
      %v213 = vld [vmem:[%s2] sm:$0xff]
      %vm214 = vcmask 130048
      %v215 = vsel %vm214, %v211, 0.0
      %216 = vadd.xlane.f32.xlu0 %v215
      %v217 = vpop.xlane.xlu0 %216
      %v218 = vadd.f32 %v213, %v217
      %vm219 = vcmask 7168
      %220 = vst.msk [vmem:[%s2] sm:$0xff] %vm219, %v218
      %v221 = vld [vmem:[%s3] sm:$0xff]
      %v222 = vmul.f32 %v211, %v211
      %v223 = vsel %vm214, %v222, 0.0
      %224 = vadd.xlane.f32.xlu0 %v223
      %v225 = vpop.xlane.xlu0 %224
      %v226 = vadd.f32 %v221, %v225
      %227 = vst.msk [vmem:[%s3] sm:$0xff] %vm219, %v226
      // Predicated region
      $region33: #{tpu_custom_call.1} parent=27 // pred_check
        %p228 = pneg %p89
      $region34: #{tpu_custom_call.1} parent=27 // pred_check_branch
        %230 = sbr.rel (%p228) target = $region36
      $region35: #{tpu_custom_call.1} parent=27 // pred_region
        _
      $region36: #{tpu_custom_call.1} parent=27 // pred_fallthru
        _
      // Predicated region
      $region37: #{tpu_custom_call.1} parent=27 // pred_check
        %p231 = pneg %p110
      $region38: #{tpu_custom_call.1} parent=27 // pred_check_branch
        %233 = sbr.rel (%p231) target = $region40
      $region39: #{tpu_custom_call.1} parent=27 // pred_region
        _
      $region40: #{tpu_custom_call.1} parent=27 // pred_fallthru
        _
      // Predicated region
      $region41: #{tpu_custom_call.1} parent=27 // pred_check
        %p234 = pneg %p89
      $region42: #{tpu_custom_call.1} parent=27 // pred_check_branch
        %236 = sbr.rel (%p234) target = $region44
      $region43: #{tpu_custom_call.1} parent=27 // pred_region
        _
      $region44: #{tpu_custom_call.1} parent=27 // pred_fallthru
        _
      // Predicated region
      $region45: #{tpu_custom_call.1} parent=27 // pred_check
        %p237 = pneg %p110
      $region46: #{tpu_custom_call.1} parent=27 // pred_check_branch
        %239 = sbr.rel (%p237) target = $region48
      $region47: #{tpu_custom_call.1} parent=27 // pred_region
        _
      $region48: #{tpu_custom_call.1} parent=27 // pred_fallthru
        _
    $region28: #{tpu_custom_call.1} parent=5 // pred_fallthru
      _
    %p240 = scmp.le.s32.totalorder 2, %s10
    // Predicated region
    $region49: #{tpu_custom_call.1} parent=5 // pred_check
      %p241 = pneg %p240
    $region50: #{tpu_custom_call.1} parent=5 // pred_check_branch
      %243 = sbr.rel (%p241) target = $region52
    $region51: #{tpu_custom_call.1} parent=5 // pred_region
      %s244 = ssub.s32 %s10, 2
    $region52: #{tpu_custom_call.1} parent=5 // pred_fallthru
      _
  $region6: #{tpu_custom_call.1} parent=0 // loop_footer
    %s14 = sadd.s32 1, %s10
  $region7: #{tpu_custom_call.1} parent=0 // loop_footer_branch
    %9 = sbr.rel target = $region3
  $region8: #{tpu_custom_call.1} parent=0 // loop_exit
    _

</llo_original>
